<compile_context>
chip_gen: v7x
topology: tpu7x:2x2x1
jax: 0.10.0
libtpu: 0.0.40
codegen_flags: <defaults>
</compile_context>

<pallas_src>
import jax
import jax.numpy as jnp
from jax.experimental import pallas as pl
from jax.experimental.pallas import tpu as pltpu


def logreg_kernel(x_ref, w_ref, b_ref, o_ref):
    # x_ref: (TILE_B, D) f32 VMEM  (batch tile)
    # w_ref: (1, D)      f32 VMEM  (same block every grid step -> resident)
    # b_ref: (1, 1)      f32 SMEM  scalar
    # o_ref: (1, TILE_B) f32 VMEM  (lane-dense output row)
    x = x_ref[...]
    w = w_ref[...]                                    # broadcasts over sublanes
    # VPU multiply + fold over D, then one XLU cross-lane reduce -> (TILE_B, 1).
    z = jnp.sum(x * w, axis=-1, keepdims=True) + b_ref[0, 0]
    # Exact, numerically stable sigmoid: exp argument is always <= 0 (no overflow).
    ez = jnp.exp(-jnp.abs(z))                         # EUP
    s = jnp.where(z >= 0, 1.0 / (1.0 + ez), ez / (1.0 + ez))
    # Tiny relayout of TILE_B scalars into the lane-dense output row (hidden
    # under the tile DMA).
    o_ref[...] = s.reshape(1, -1)


def _pick_tile_b(feature_dim):
    row_bytes = feature_dim * 4
    target_tile_bytes = 1 << 20        # ~1 MiB x tile: near HBM roofline, low step overhead
    tb = max(128, target_tile_bytes // row_bytes)
    tb = min(tb, 4096)                 # keep buffered footprint small even at tiny D
    tb = (tb // 128) * 128             # output lane axis: multiple of 128
    return max(tb, 128)


def logistic_regression_forward(x, weight, bias):
    """x: (B, D) f32; weight: (1, D) f32 (nn.Linear layout); bias: (1,) f32.

    Returns (B, 1) f32 = sigmoid(x @ weight.T + bias).
    """
    B, D = x.shape
    x = x.astype(jnp.float32)
    w = weight.astype(jnp.float32).reshape(1, D)
    b = bias.astype(jnp.float32).reshape(1, 1)
    # TODO(synk): streaming x as bf16 would halve HBM traffic (~2x win) if numerics allow.

    tb = _pick_tile_b(D)
    if B <= tb:
        # Trivially small input: one block whose dims equal the full array dims,
        # so no (8,128) alignment and no padding are required at all.
        tb = B
    else:
        assert tb % 128 == 0 and tb % 8 == 0, "multi-tile TILE_B must be 128-aligned"

    num_steps = pl.cdiv(B, tb)         # ragged last block handled by Pallas (no jnp.pad)
    x_tile_bytes = tb * D * 4

    # Deeper buffering hides DMA-issue latency when per-tile DMAs are small.
    if num_steps > 1 and x_tile_bytes <= (1 << 20):
        x_spec = pl.BlockSpec((tb, D), lambda i: (i, 0), pipeline_mode=pl.Buffered(3))
        n_buf = 3
    else:
        x_spec = pl.BlockSpec((tb, D), lambda i: (i, 0))
        n_buf = 2

    compiler_kwargs = dict(dimension_semantics=("parallel",))
    est_vmem = n_buf * x_tile_bytes + 2 * tb * 4 + D * 4 + (256 << 10)
    if est_vmem > (12 << 20):
        # Very large D only: raise the scoped-VMEM limit with headroom
        # (capped well under v7x's 64 MiB physical VMEM per TensorCore).
        compiler_kwargs["vmem_limit_bytes"] = int(min(2 * est_vmem, 48 << 20))

    out = pl.pallas_call(
        logreg_kernel,
        out_shape=jax.ShapeDtypeStruct((1, B), jnp.float32),
        grid=(num_steps,),
        in_specs=[
            x_spec,                                             # x: batch-tiled
            pl.BlockSpec((1, D), lambda i: (0, 0)),             # weight: resident
            pl.BlockSpec(memory_space=pltpu.MemorySpace.SMEM),  # bias scalar
        ],
        out_specs=pl.BlockSpec((1, tb), lambda i: (0, i)),      # lane-dense row
        compiler_params=pltpu.CompilerParams(**compiler_kwargs),
        cost_estimate=pl.CostEstimate(
            flops=2 * B * D,
            transcendentals=B,
            bytes_accessed=B * D * 4 + D * 4 + B * 4 + 4,
        ),
    )(x, w, b)

    # (1, B) lane-dense row -> (B, 1) column (free reshape) to match the module.
    return out.reshape(B, 1)


if __name__ == "__main__":
    key = jax.random.PRNGKey(0)
    kx, kw, kb, kx2 = jax.random.split(key, 4)

    batch = 8
    input_size = 32

    # Deterministic inputs / params (nn.Linear-style uniform init +-1/sqrt(D)).
    x = jax.random.normal(kx, (batch, input_size), dtype=jnp.float32)
    bound = 1.0 / (input_size ** 0.5)
    weight = jax.random.uniform(
        kw, (1, input_size), dtype=jnp.float32, minval=-bound, maxval=bound
    )
    bias = jax.random.uniform(
        kb, (1,), dtype=jnp.float32, minval=-bound, maxval=bound
    )

    def ref_fn(xv):
        # Elementwise reference (no MXU precision ambiguity), exact sigmoid.
        return jax.nn.sigmoid(jnp.sum(xv * weight[0], axis=-1, keepdims=True) + bias)

    # 1) Module-consistent small shape: single full-array block path.
    out = jax.block_until_ready(logistic_regression_forward(x, weight, bias))
    assert out.shape == (batch, 1)
    assert jnp.allclose(out, ref_fn(x), atol=1e-5, rtol=1e-5)

    # 2) Larger batch: exercises the multi-tile "parallel" grid, the ragged
    #    last block (no padding), and the Buffered(3) small-tile pipeline.
    batch2 = 9000
    x2 = jax.random.normal(kx2, (batch2, input_size), dtype=jnp.float32)
    out2 = jax.block_until_ready(logistic_regression_forward(x2, weight, bias))
    assert out2.shape == (batch2, 1)
    assert jnp.allclose(out2, ref_fn(x2), atol=1e-5, rtol=1e-5)

    print("KERNEL_OK")
</pallas_src>

<mosaic_0001>
module attributes {stable_mosaic.version = 11 : i64} {
  func.func @logreg_kernel(%arg0: i32, %arg1: memref<8x32xf32, #tpu.memory_space<vmem>>, %arg2: memref<1x32xf32, #tpu.memory_space<vmem>>, %arg3: memref<1x1xf32, #tpu.memory_space<smem>>, %arg4: memref<1x8xf32, #tpu.memory_space<vmem>>) attributes {dimension_semantics = [#tpu.dimension_semantics<parallel>], iteration_bounds = array<i64: 1>, scalar_prefetch = 0 : i64, scratch_operands = 0 : i64, tpu.core_type = #tpu.core_type<tc>, window_params = [{transform_indices = @transform_0, window_bounds = array<i64: 8, 32>}, {pipeline_mode = #tpu.pipeline_mode<synchronous>, transform_indices = @transform_1, window_bounds = array<i64: 1, 32>}, {transform_indices = @transform_2, window_bounds = array<i64: 1, 1>}, {transform_indices = @transform_3, window_bounds = array<i64: 1, 8>}]} {
    %c0 = arith.constant 0 : index
    %c0_0 = arith.constant 0 : index
    %0 = vector.load %arg1[%c0, %c0_0] : memref<8x32xf32, #tpu.memory_space<vmem>>, vector<8x32xf32>
    %c0_1 = arith.constant 0 : index
    %c0_2 = arith.constant 0 : index
    %1 = vector.load %arg2[%c0_1, %c0_2] : memref<1x32xf32, #tpu.memory_space<vmem>>, vector<1x32xf32>
    %2 = vector.broadcast %1 : vector<1x32xf32> to vector<8x32xf32>
    %3 = arith.mulf %0, %2 : vector<8x32xf32>
    %cst = arith.constant dense<0.000000e+00> : vector<8xf32>
    %4 = vector.multi_reduction <add>, %3, %cst [1] : vector<8x32xf32> to vector<8xf32>
    %5 = vector.shape_cast %4 : vector<8xf32> to vector<8x1xf32>
    %c0_3 = arith.constant 0 : index
    %c0_4 = arith.constant 0 : index
    %6 = memref.load %arg3[%c0_3, %c0_4] : memref<1x1xf32, #tpu.memory_space<smem>>
    %7 = vector.broadcast %6 : f32 to vector<8x1xf32>
    %8 = arith.addf %5, %7 : vector<8x1xf32>
    %9 = math.absf %8 : vector<8x1xf32>
    %cst_5 = arith.constant 0.000000e+00 : f32
    %10 = vector.broadcast %cst_5 : f32 to vector<8x1xf32>
    %11 = arith.subf %10, %9 : vector<8x1xf32>
    %12 = math.exp %11 : vector<8x1xf32>
    %cst_6 = arith.constant 0.000000e+00 : f32
    %13 = vector.broadcast %cst_6 : f32 to vector<8x1xf32>
    %14 = arith.cmpf oge, %8, %13 : vector<8x1xf32>
    %cst_7 = arith.constant 1.000000e+00 : f32
    %15 = vector.broadcast %cst_7 : f32 to vector<8x1xf32>
    %16 = arith.addf %15, %12 : vector<8x1xf32>
    %cst_8 = arith.constant 1.000000e+00 : f32
    %17 = vector.broadcast %cst_8 : f32 to vector<8x1xf32>
    %18 = arith.divf %17, %16 : vector<8x1xf32>
    %cst_9 = arith.constant 1.000000e+00 : f32
    %19 = vector.broadcast %cst_9 : f32 to vector<8x1xf32>
    %20 = arith.addf %19, %12 : vector<8x1xf32>
    %21 = arith.divf %12, %20 : vector<8x1xf32>
    %22 = arith.select %14, %18, %21 : vector<8x1xi1>, vector<8x1xf32>
    %23 = vector.shape_cast %22 : vector<8x1xf32> to vector<1x8xf32>
    %c0_10 = arith.constant 0 : index
    %c0_11 = arith.constant 0 : index
    %24 = vector.load %arg4[%c0_10, %c0_11] : memref<1x8xf32, #tpu.memory_space<vmem>>, vector<1x8xf32>
    tpu.vector_store %arg4[%c0_10, %c0_11], %23 {strides = array<i32>} : memref<1x8xf32, #tpu.memory_space<vmem>>, vector<1x8xf32>,
    return
  }
  func.func @transform_0(%arg0: i32) -> (i32, i32) {
    %c0_i32 = arith.constant 0 : i32
    %c0_i32_0 = arith.constant 0 : i32
    return %arg0, %c0_i32 : i32, i32
  }
  func.func @transform_1(%arg0: i32) -> (i32, i32) {
    %c0_i32 = arith.constant 0 : i32
    %c0_i32_0 = arith.constant 0 : i32
    %c0_i32_1 = arith.constant 0 : i32
    return %c0_i32, %c0_i32_0 : i32, i32
  }
  func.func @transform_2(%arg0: i32) -> (i32, i32) {
    %c0_i32 = arith.constant 0 : i32
    %c0_i32_0 = arith.constant 0 : i32
    %c0_i32_1 = arith.constant 0 : i32
    return %c0_i32, %c0_i32_0 : i32, i32
  }
  func.func @transform_3(%arg0: i32) -> (i32, i32) {
    %c0_i32 = arith.constant 0 : i32
    %c0_i32_0 = arith.constant 0 : i32
    return %c0_i32, %arg0 : i32, i32
  }
}

</mosaic_0001>

<llo_original>
// kernel: tpu_custom_call.1
$region0: #{tpu_custom_call.1}
  #allocation0 [shape = 'u32[]', space=smem, size = 0x4, offset = 0x4, fixed_abs, tag = 'smem constant byte address 0x4 - core index']
  #allocation1 [shape = 'u32[144,128]{1,0:T(1,128)}', space=vmem, size = 0x12000, scoped, tag = 'internal scratch']
  #allocation2 [shape = 'f32[1,1]{1,0:T(1,128)S(6)}', space=smem, size = 0x200, scoped, tag = 'scoped memory for tpu_custom_call.1']
  %s0 = inlined_call_operand.hbm [shape: f32[8,32], index: 0, kind: input, shape index: {}]
  %s1 = inlined_call_operand.vmem [shape: f32[1,32], index: 1, kind: input, shape index: {}]
  %s2 = inlined_call_operand.<no memory space> [shape: f32[1,1], index: 2, kind: input, shape index: {}]
  %s3 = inlined_call_operand.hbm [shape: f32[1,8], index: 3, kind: output, shape index: {}]
  %s4 = sld [smem:[#allocation0]]
  $region26: #{tpu_custom_call.1} parent=0
    _
  %s6 = ssub.s32 1, %s4
  %s7 = scalar_select 0, %s6, %s4
  %8 = sst [smem:[#allocation2]] %s2
  $region1: #{tpu_custom_call.1} parent=0
    #allocation3 [shape = 'u8[4096]{0}', space=vmem, size = 0x1000, scoped, tag = 'input window, operand 0, single buffered']
    #allocation4 [shape = 's32[1]{0}', space=sflag, size = 0x4, scoped, tag = 'scoped memory for tpu_custom_call.1']
    #allocation5 [shape = 's32[1]{0}', space=sflag, size = 0x4, scoped, tag = 'scoped memory for tpu_custom_call.1']
    #allocation6 [shape = 'u8[512]{0}', space=vmem, size = 0x400, scoped, tag = 'output window, operand 0, single buffered']
    %9 = vsyncpa [#allocation4], 0
    %10 = vsyncpa [#allocation5], 0
    // Predicated region
    $region2: #{tpu_custom_call.1} parent=1 // pred_check
      _
    $region3: #{tpu_custom_call.1} parent=1 // pred_check_branch
      %12 = sbr.rel (0) target = $region5
    $region4: #{tpu_custom_call.1} parent=1 // pred_region
      %s14 = ssub.s32 128, 128
      %15 = vsyncadd [#allocation4], %s14
      %s17 = sshll.u32 [#allocation3], 4
      %s18 = int_to_ptr.vmem [resolvable:$true] %s17
      %20 = dma.hbm_to_vmem [thread:$0]  %s0, 128, %s18, [#allocation4]
    $region5: #{tpu_custom_call.1} parent=1 // pred_fallthru
      _
    // Predicated region
    $region6: #{tpu_custom_call.1} parent=1 // pred_check
      _
    $region7: #{tpu_custom_call.1} parent=1 // pred_check_branch
      %22 = sbr.rel (0) target = $region9
    $region8: #{tpu_custom_call.1} parent=1 // pred_region
      _
    $region9: #{tpu_custom_call.1} parent=1 // pred_fallthru
      _
    // Predicated region
    $region10: #{tpu_custom_call.1} parent=1 // pred_check
      _
    $region11: #{tpu_custom_call.1} parent=1 // pred_check_branch
      %24 = sbr.rel (0) target = $region13
    $region12: #{tpu_custom_call.1} parent=1 // pred_region
      _
    $region13: #{tpu_custom_call.1} parent=1 // pred_fallthru
      _
    // Predicated region
    $region14: #{tpu_custom_call.1} parent=1 // pred_check
      _
    $region15: #{tpu_custom_call.1} parent=1 // pred_check_branch
      %26 = sbr.rel (0) target = $region17
    $region16: #{tpu_custom_call.1} parent=1 // pred_region
      %27 = dma.done [#allocation4], 128
    $region17: #{tpu_custom_call.1} parent=1 // pred_fallthru
      _
    %v28 = vld [vmem:[#allocation3] sm:$0xff]
    %v29 = vld [vmem:[%s1] sm:$0x1]
    %v31 = vlaneseq
    %v32 = vshrl.u32 %v31, 7
    %v33 = vsub.s32 0, %v32
    %v34 = vrot.slane %v29, %v33
    %v36 = vmul.f32 %v28, %v34
    %vm37 = vcmask 261120
    %v38 = vsel %vm37, %v36, 0.0
    %39 = vadd.xlane.f32.xlu0 %v38
    %v40 = vpop.xlane.xlu0 %39
    %s41 = sld [smem:[#allocation2]]
    %v42 = vstv %s41
    %v43 = vadd.f32 %v40, %v42
    %v44 = vand.u32 2147483647, %v43
    %v45 = vsub.f32 0.0, %v44
    %v46 = vmul.f32 %v45, 1.442695
    %v47 = vpow.pop %v46
    %vm48 = vcmp.ge.f32.partialorder %v43, 0.0
    %v49 = vadd.f32 %v47, 1.0
    %v50 = vrcp.pop %v49
    %v51 = vmul.f32 1.0, %v50
    %v52 = vmul.f32 %v47, %v50
    %v53 = vsel %vm48, %v51, %v52
    %v55 = vlaneseq
    %v56 = vand.u32 %v55, 127
    %v57 = vlaneseq
    %v58 = vshrl.u32 %v57, 7
    %v59 = vsub.s32 %v56, %v58
    %v60 = vrot.slane %v53, %v59
    %vm62 = vcmask 57344
    %63 = vst.msk [vmem:[#allocation6] sm:$0x1] %vm62, %v60
    // Predicated region
    $region18: #{tpu_custom_call.1} parent=1 // pred_check
      _
    $region19: #{tpu_custom_call.1} parent=1 // pred_check_branch
      %65 = sbr.rel (0) target = $region21
    $region20: #{tpu_custom_call.1} parent=1 // pred_region
      %s67 = ssub.s32 16, 16
      %68 = vsyncadd [#allocation5], %s67
      %s70 = sshll.u32 [#allocation6], 4
      %s71 = int_to_ptr.vmem [resolvable:$true] %s70
      %73 = dma.vmem_to_hbm [thread:$0]  %s71, 16, %s3, [#allocation5]
    $region21: #{tpu_custom_call.1} parent=1 // pred_fallthru
      _
    // Predicated region
    $region22: #{tpu_custom_call.1} parent=1 // pred_check
      _
    $region23: #{tpu_custom_call.1} parent=1 // pred_check_branch
      %75 = sbr.rel (0) target = $region25
    $region24: #{tpu_custom_call.1} parent=1 // pred_region
      %76 = dma.done [#allocation5], 16
    $region25: #{tpu_custom_call.1} parent=1 // pred_fallthru
      _
    %77 = vsyncpa [#allocation4], 1
    %78 = vsyncpa [#allocation5], 1

</llo_original>
